<compile_context>
chip_gen: v6e
topology: v6e:2x2x1
jax: 0.10.0
libtpu: 0.0.40
codegen_flags: <defaults>
</compile_context>

<pallas_src>
import functools

import jax
import jax.numpy as jnp
from jax import lax
from jax.experimental import pallas as pl
from jax.experimental.pallas import tpu as pltpu


def _local_conv1d_kernel(x_ref, halo_ref, w_ref, o_ref, *, pad):
    # x_ref   : (tile_r, tile_h)   current row tile, input dtype
    # halo_ref: (2*pad, tile_h)    rows just before the tile, then just after
    #                              (zeros at the sequence ends == 'same' pad)
    # w_ref   : (K, tile_h)        per-channel depthwise taps, float32
    # o_ref   : (tile_r, tile_h)   output, input dtype
    tile_r, tile_h = o_ref.shape
    K = w_ref.shape[0]

    # Cast once to fp32 (module computes the conv in fp32).
    x32 = x_ref[...].astype(jnp.float32)
    rows = lax.broadcasted_iota(jnp.int32, (tile_r, tile_h), 0)

    # Centre tap.
    acc = x32 * w_ref[pl.ds(pad, 1), :]

    # Off-centre taps: sublane roll on the XLU; the <= pad rows that wrapped
    # around are patched from the halo slab (cheap jnp.where per boundary row).
    for k in range(K):                                  # static unroll, K tiny (3)
        d = k - pad
        if d == 0:
            continue
        src = pltpu.roll(x32, shift=(-d) % tile_r, axis=0)   # src[r] = x32[r + d]
        if d < 0:
            for j in range(-d):                          # top rows <- "lo" halo
                row = halo_ref[pl.ds(pad + d + j, 1), :].astype(jnp.float32)
                src = jnp.where(rows == j, row, src)
        else:
            for j in range(d):                           # bottom rows <- "hi" halo
                row = halo_ref[pl.ds(pad + j, 1), :].astype(jnp.float32)
                src = jnp.where(rows == tile_r - d + j, row, src)
        acc = acc + src * w_ref[pl.ds(k, 1), :]

    o_ref[...] = acc.astype(o_ref.dtype)


def _round_up(x, m):
    return ((x + m - 1) // m) * m


def local_conv1d(hidden_states, weight, *, kernel_size=3,
                 tile_rows=1024, tile_hidden=2048, max_block_elems=1 << 20):
    """hidden_states: [S, B, H] (any float dtype); weight: [H, 1, K] float32."""
    S, B, H = hidden_states.shape
    K = kernel_size
    assert K % 2 == 1, "'same' depthwise conv assumes odd kernel_size"
    pad = K // 2
    assert weight.shape == (H, 1, K)
    dtype = hidden_states.dtype

    # Flatten (batch, hidden) onto the lane axis: column c = b*H + h. Free reshape.
    C = B * H
    x_flat = hidden_states.reshape(S, C)

    # Taps replicated across batch on the lane axis: w_flat[k, b*H + h] = weight[h, 0, k].
    w_flat = jnp.tile(jnp.transpose(weight[:, 0, :], (1, 0)).astype(jnp.float32), (1, B))

    # ---- Tile selection (pad up to tile multiples; padding sliced off at the end). ----
    tile_h_cap = max(128, min(_round_up(C, 128), _round_up(tile_hidden, 128)))
    n_ht = max(1, pl.cdiv(C, tile_h_cap))
    tile_h = _round_up(pl.cdiv(C, n_ht), 128)
    Cp = n_ht * tile_h

    row_budget = max(8, (max_block_elems // tile_h) // 8 * 8)
    row_cap = max(8, min(_round_up(tile_rows, 8), row_budget))
    n_rt = max(1, pl.cdiv(S, row_cap))
    if n_rt == 1 and n_ht == 1 and S >= 16:
        n_rt = 2                                  # keep both TCs busy on v7x megacore
    tile_r = _round_up(pl.cdiv(S, n_rt), 8)
    Sp = n_rt * tile_r
    assert pad <= tile_r

    if Sp != S or Cp != C:
        x_flat = jnp.pad(x_flat, ((0, Sp - S), (0, Cp - C)))
    if Cp != C:
        w_flat = jnp.pad(w_flat, ((0, 0), (0, Cp - C)))

    # Per-tile halo slab: halo[i, :pad] = pad rows just before tile i (zeros at the
    # sequence start), halo[i, pad:] = pad rows just after tile i (zeros at the end).
    x_tiles = x_flat.reshape(n_rt, tile_r, Cp)
    zrows = jnp.zeros((1, pad, Cp), dtype)
    halo = jnp.concatenate([
        jnp.concatenate([zrows, x_tiles[:-1, tile_r - pad:, :]], axis=0),
        jnp.concatenate([x_tiles[1:, :pad, :], zrows], axis=0),
    ], axis=1)                                    # (n_rt, 2*pad, Cp)

    bytes_el = jnp.dtype(dtype).itemsize
    cost = pl.CostEstimate(
        flops=2 * K * Sp * Cp,
        transcendentals=0,
        bytes_accessed=int(2 * Sp * Cp * bytes_el + halo.size * bytes_el
                           + n_ht * K * tile_h * 4),
    )

    out_flat = pl.pallas_call(
        functools.partial(_local_conv1d_kernel, pad=pad),
        out_shape=jax.ShapeDtypeStruct((Sp, Cp), dtype),
        # Hidden axis OUTER -> the weight block index is constant across the inner
        # row loop, so the taps stay resident in VMEM (no re-DMA per row tile).
        grid=(n_ht, n_rt),
        in_specs=[
            pl.BlockSpec((tile_r, tile_h), lambda j, i: (i, j)),
            pl.BlockSpec((None, 2 * pad, tile_h), lambda j, i: (i, 0, j)),
            pl.BlockSpec((K, tile_h), lambda j, i: (0, j)),
        ],
        out_specs=pl.BlockSpec((tile_r, tile_h), lambda j, i: (i, j)),
        compiler_params=pltpu.CompilerParams(
            dimension_semantics=("parallel", "parallel"),
            vmem_limit_bytes=48 * 1024 * 1024,
        ),
        cost_estimate=cost,
    )(x_flat, halo, w_flat)

    out_flat = out_flat[:S, :C]
    return out_flat.reshape(S, B, H)


def _reference(hidden_states, weight, kernel_size=3):
    """Pure-JAX reference mirroring the PyTorch forward exactly."""
    pad = kernel_size // 2
    x32 = hidden_states.astype(jnp.float32)            # [S, B, H]
    x_ncl = jnp.transpose(x32, (1, 2, 0))               # permute(1,2,0) -> [B, H, S]
    y_ncl = lax.conv_general_dilated(
        x_ncl, weight.astype(jnp.float32),               # weight [H, 1, K] (OIH)
        window_strides=(1,),
        padding=[(pad, pad)],
        dimension_numbers=("NCH", "OIH", "NCH"),
        feature_group_count=hidden_states.shape[2],
    )
    y = jnp.transpose(y_ncl, (2, 0, 1))                  # permute(2,0,1) -> [S, B, H]
    return y.astype(hidden_states.dtype)


if __name__ == "__main__":
    key = jax.random.PRNGKey(0)
    kx, kw, kx2, kw2 = jax.random.split(key, 4)

    # Test 1: module-consistent small shapes (seq=8, batch=2, hidden=128), default tiles.
    S, B, H, K = 8, 2, 128, 3
    hidden_states = jax.random.normal(kx, (S, B, H), dtype=jnp.float32).astype(jnp.bfloat16)
    # nn.init.normal_(weight, mean=0.0, std=0.02); depthwise Conv1d weight shape (H, 1, K)
    weight = 0.02 * jax.random.normal(kw, (H, 1, K), dtype=jnp.float32)

    out = jax.block_until_ready(local_conv1d(hidden_states, weight, kernel_size=K))
    ref = _reference(hidden_states, weight, kernel_size=K)
    assert out.shape == (S, B, H) and out.dtype == hidden_states.dtype
    if not jnp.allclose(out.astype(jnp.float32), ref.astype(jnp.float32),
                        atol=2e-2, rtol=2e-2):
        raise AssertionError("Pallas LocalConv1D mismatch vs reference (test 1)")

    # Test 2: force a multi-tile (hidden x rows) grid to exercise the roll + halo-patch path.
    S2, B2, H2 = 64, 2, 256
    hs2 = jax.random.normal(kx2, (S2, B2, H2), dtype=jnp.float32).astype(jnp.bfloat16)
    w2 = 0.02 * jax.random.normal(kw2, (H2, 1, K), dtype=jnp.float32)
    out2 = jax.block_until_ready(
        local_conv1d(hs2, w2, kernel_size=K, tile_rows=16, tile_hidden=256))
    ref2 = _reference(hs2, w2, kernel_size=K)
    if not jnp.allclose(out2.astype(jnp.float32), ref2.astype(jnp.float32),
                        atol=2e-2, rtol=2e-2):
        raise AssertionError("Pallas LocalConv1D mismatch vs reference (test 2)")

    # TODO(synk): optional conv bias (add_bias_linear=True) not implemented; module default is bias=False.
    print("KERNEL_OK")
</pallas_src>

<mosaic_0001>
module attributes {stable_mosaic.version = 11 : i64} {
  func.func @_local_conv1d_kernel(%arg0: i32, %arg1: i32, %arg2: memref<8x256xbf16, #tpu.memory_space<vmem>>, %arg3: memref<1x2x256xbf16, #tpu.memory_space<vmem>>, %arg4: memref<3x256xf32, #tpu.memory_space<vmem>>, %arg5: memref<8x256xbf16, #tpu.memory_space<vmem>>) attributes {dimension_semantics = [#tpu.dimension_semantics<parallel>, #tpu.dimension_semantics<parallel>], iteration_bounds = array<i64: 1, 1>, scalar_prefetch = 0 : i64, scratch_operands = 0 : i64, tpu.core_type = #tpu.core_type<tc>, window_params = [{transform_indices = @transform_0, window_bounds = array<i64: 8, 256>}, {transform_indices = @transform_1, window_bounds = array<i64: 1, 2, 256>}, {transform_indices = @transform_2, window_bounds = array<i64: 3, 256>}, {transform_indices = @transform_3, window_bounds = array<i64: 8, 256>}]} {
    %c0 = arith.constant 0 : index
    %c0_0 = arith.constant 0 : index
    %0 = vector.load %arg2[%c0, %c0_0] : memref<8x256xbf16, #tpu.memory_space<vmem>>, vector<8x256xbf16>
    %1 = arith.extf %0 : vector<8x256xbf16> to vector<8x256xf32>
    %2 = tpu.iota {dimensions = array<i32: 0>} : vector<8x256xi32>
    %c1 = arith.constant 1 : index
    %c0_1 = arith.constant 0 : index
    %3 = vector.load %arg4[%c1, %c0_1] : memref<3x256xf32, #tpu.memory_space<vmem>>, vector<1x256xf32>
    %4 = vector.broadcast %3 : vector<1x256xf32> to vector<8x256xf32>
    %5 = arith.mulf %1, %4 : vector<8x256xf32>
    %c1_i32 = arith.constant 1 : i32
    %6 = tpu.dynamic_rotate %1 by %c1_i32 dim 0 : vector<8x256xf32>, i32 -> vector<8x256xf32>
    %c0_2 = arith.constant 0 : index
    %c0_3 = arith.constant 0 : index
    %c0_4 = arith.constant 0 : index
    %7 = vector.load %arg3[%c0_2, %c0_3, %c0_4] : memref<1x2x256xbf16, #tpu.memory_space<vmem>>, vector<1x1x256xbf16>
    %8 = vector.shape_cast %7 : vector<1x1x256xbf16> to vector<1x256xbf16>
    %9 = arith.extf %8 : vector<1x256xbf16> to vector<1x256xf32>
    %c0_i32 = arith.constant 0 : i32
    %10 = vector.broadcast %c0_i32 : i32 to vector<8x256xi32>
    %11 = arith.cmpi eq, %2, %10 : vector<8x256xi32>
    %12 = vector.shape_cast %9 : vector<1x256xf32> to vector<1x256xf32>
    %13 = vector.broadcast %12 : vector<1x256xf32> to vector<8x256xf32>
    %14 = arith.select %11, %13, %6 : vector<8x256xi1>, vector<8x256xf32>
    %c0_5 = arith.constant 0 : index
    %c0_6 = arith.constant 0 : index
    %15 = vector.load %arg4[%c0_5, %c0_6] : memref<3x256xf32, #tpu.memory_space<vmem>>, vector<1x256xf32>
    %16 = vector.broadcast %15 : vector<1x256xf32> to vector<8x256xf32>
    %17 = arith.mulf %14, %16 : vector<8x256xf32>
    %18 = arith.addf %5, %17 : vector<8x256xf32>
    %c7_i32 = arith.constant 7 : i32
    %19 = tpu.dynamic_rotate %1 by %c7_i32 dim 0 : vector<8x256xf32>, i32 -> vector<8x256xf32>
    %c0_7 = arith.constant 0 : index
    %c1_8 = arith.constant 1 : index
    %c0_9 = arith.constant 0 : index
    %20 = vector.load %arg3[%c0_7, %c1_8, %c0_9] : memref<1x2x256xbf16, #tpu.memory_space<vmem>>, vector<1x1x256xbf16>
    %21 = vector.shape_cast %20 : vector<1x1x256xbf16> to vector<1x256xbf16>
    %22 = arith.extf %21 : vector<1x256xbf16> to vector<1x256xf32>
    %c7_i32_10 = arith.constant 7 : i32
    %23 = vector.broadcast %c7_i32_10 : i32 to vector<8x256xi32>
    %24 = arith.cmpi eq, %2, %23 : vector<8x256xi32>
    %25 = vector.shape_cast %22 : vector<1x256xf32> to vector<1x256xf32>
    %26 = vector.broadcast %25 : vector<1x256xf32> to vector<8x256xf32>
    %27 = arith.select %24, %26, %19 : vector<8x256xi1>, vector<8x256xf32>
    %c2 = arith.constant 2 : index
    %c0_11 = arith.constant 0 : index
    %28 = vector.load %arg4[%c2, %c0_11] : memref<3x256xf32, #tpu.memory_space<vmem>>, vector<1x256xf32>
    %29 = vector.broadcast %28 : vector<1x256xf32> to vector<8x256xf32>
    %30 = arith.mulf %27, %29 : vector<8x256xf32>
    %31 = arith.addf %18, %30 : vector<8x256xf32>
    %32 = arith.truncf %31 : vector<8x256xf32> to vector<8x256xbf16>
    %c0_12 = arith.constant 0 : index
    %c0_13 = arith.constant 0 : index
    %33 = vector.load %arg5[%c0_12, %c0_13] : memref<8x256xbf16, #tpu.memory_space<vmem>>, vector<8x256xbf16>
    tpu.vector_store %arg5[%c0_12, %c0_13], %32 {strides = array<i32>} : memref<8x256xbf16, #tpu.memory_space<vmem>>, vector<8x256xbf16>,
    return
  }
  func.func @transform_0(%arg0: i32, %arg1: i32) -> (i32, i32) {
    %c0_i32 = arith.constant 0 : i32
    return %arg1, %arg0 : i32, i32
  }
  func.func @transform_1(%arg0: i32, %arg1: i32) -> (i32, i32, i32) {
    %c0_i32 = arith.constant 0 : i32
    %c0_i32_0 = arith.constant 0 : i32
    return %arg1, %c0_i32, %arg0 : i32, i32, i32
  }
  func.func @transform_2(%arg0: i32, %arg1: i32) -> (i32, i32) {
    %c0_i32 = arith.constant 0 : i32
    %c0_i32_0 = arith.constant 0 : i32
    return %c0_i32, %arg0 : i32, i32
  }
  func.func @transform_3(%arg0: i32, %arg1: i32) -> (i32, i32) {
    %c0_i32 = arith.constant 0 : i32
    return %arg1, %arg0 : i32, i32
  }
}

</mosaic_0001>

<llo_original>
// kernel: tpu_custom_call.1
$region0: #{tpu_custom_call.1}
  #allocation0 [shape = 'u32[]', space=smem, size = 0x4, offset = 0x4, fixed_abs, tag = 'smem constant byte address 0x4 - core index']
  #allocation1 [shape = 'u32[144,128]{1,0:T(1,128)}', space=vmem, size = 0x12000, scoped, tag = 'internal scratch']
  %s0 = inlined_call_operand.hbm [shape: bf16[8,256], index: 0, kind: input, shape index: {}]
  %s1 = inlined_call_operand.hbm [shape: bf16[1,2,256], index: 1, kind: input, shape index: {}]
  %s2 = inlined_call_operand.hbm [shape: f32[3,256], index: 2, kind: input, shape index: {}]
  %s3 = inlined_call_operand.hbm [shape: bf16[8,256], index: 3, kind: output, shape index: {}]
  %s4 = sld [smem:[#allocation0]]
  $region34: #{tpu_custom_call.1} parent=0
    _
  %s6 = ssub.s32 1, %s4
  %s7 = scalar_select 0, %s6, %s4
  $region1: #{tpu_custom_call.1} parent=0
    #allocation2 [shape = 'u8[4096]{0}', space=vmem, size = 0x1000, scoped, tag = 'input window, operand 0, single buffered']
    #allocation3 [shape = 's32[1]{0}', space=sflag, size = 0x4, scoped, tag = 'scoped memory for tpu_custom_call.1']
    #allocation4 [shape = 's32[1]{0}', space=sflag, size = 0x4, scoped, tag = 'scoped memory for tpu_custom_call.1']
    #allocation5 [shape = 'u8[1024]{0}', space=vmem, size = 0x400, scoped, tag = 'input window, operand 1, single buffered']
    #allocation6 [shape = 's32[1]{0}', space=sflag, size = 0x4, scoped, tag = 'scoped memory for tpu_custom_call.1']
    #allocation7 [shape = 'u8[4096]{0}', space=vmem, size = 0x1000, scoped, tag = 'input window, operand 2, single buffered']
    #allocation8 [shape = 'u8[4096]{0}', space=vmem, size = 0x1000, scoped, tag = 'output window, operand 0, single buffered']
    %8 = vsyncpa [#allocation3], 0
    %9 = vsyncpa [#allocation6], 0
    %10 = vsyncpa [#allocation4], 0
    // Predicated region
    $region2: #{tpu_custom_call.1} parent=1 // pred_check
      _
    $region3: #{tpu_custom_call.1} parent=1 // pred_check_branch
      %12 = sbr.rel (0) target = $region5
    $region4: #{tpu_custom_call.1} parent=1 // pred_region
      %s14 = ssub.s32 128, 128
      %15 = vsyncadd [#allocation3], %s14
      %s17 = sshll.u32 [#allocation2], 4
      %s18 = int_to_ptr.vmem [resolvable:$true] %s17
      %20 = dma.hbm_to_vmem [thread:$0]  %s0, 128, %s18, [#allocation3]
    $region5: #{tpu_custom_call.1} parent=1 // pred_fallthru
      _
    // Predicated region
    $region6: #{tpu_custom_call.1} parent=1 // pred_check
      _
    $region7: #{tpu_custom_call.1} parent=1 // pred_check_branch
      %22 = sbr.rel (0) target = $region9
    $region8: #{tpu_custom_call.1} parent=1 // pred_region
      %s24 = ssub.s32 32, 32
      %25 = vsyncadd [#allocation6], %s24
      %s27 = sshll.u32 [#allocation5], 4
      %s28 = int_to_ptr.vmem [resolvable:$true] %s27
      %30 = dma.hbm_to_vmem [thread:$0]  %s1, 32, %s28, [#allocation6]
    $region9: #{tpu_custom_call.1} parent=1 // pred_fallthru
      _
    // Predicated region
    $region10: #{tpu_custom_call.1} parent=1 // pred_check
      _
    $region11: #{tpu_custom_call.1} parent=1 // pred_check_branch
      %32 = sbr.rel (0) target = $region13
    $region12: #{tpu_custom_call.1} parent=1 // pred_region
      %s34 = ssub.s32 128, 128
      %35 = vsyncadd [#allocation6], %s34
      %s37 = sshll.u32 [#allocation7], 4
      %s38 = int_to_ptr.vmem [resolvable:$true] %s37
      %40 = dma.hbm_to_vmem [thread:$0]  %s2, 128, %s38, [#allocation6]
    $region13: #{tpu_custom_call.1} parent=1 // pred_fallthru
      _
    // Predicated region
    $region14: #{tpu_custom_call.1} parent=1 // pred_check
      _
    $region15: #{tpu_custom_call.1} parent=1 // pred_check_branch
      %42 = sbr.rel (0) target = $region17
    $region16: #{tpu_custom_call.1} parent=1 // pred_region
      %43 = dma.done [#allocation3], 128
    $region17: #{tpu_custom_call.1} parent=1 // pred_fallthru
      _
    // Predicated region
    $region18: #{tpu_custom_call.1} parent=1 // pred_check
      _
    $region19: #{tpu_custom_call.1} parent=1 // pred_check_branch
      %45 = sbr.rel (0) target = $region21
    $region20: #{tpu_custom_call.1} parent=1 // pred_region
      %46 = dma.done [#allocation6], 32
    $region21: #{tpu_custom_call.1} parent=1 // pred_fallthru
      _
    // Predicated region
    $region22: #{tpu_custom_call.1} parent=1 // pred_check
      _
    $region23: #{tpu_custom_call.1} parent=1 // pred_check_branch
      %48 = sbr.rel (0) target = $region25
    $region24: #{tpu_custom_call.1} parent=1 // pred_region
      %49 = dma.done [#allocation6], 128
    $region25: #{tpu_custom_call.1} parent=1 // pred_fallthru
      _
    %v50 = vld [vmem:[#allocation2] sm:$0xff]
    %v51 = vunpack.c.l.bf16 %v50
    %v52 = vunpack.c.h.bf16 %v50
    %v53 = vlaneseq
    %v54 = vshrl.u32 %v53, 7
    %s55 = scalar_lea.vmem [#allocation7], 1
    %v56 = vld [vmem:[%s55] ss:$4 sm:$0x3]
    %v58 = vlaneseq
    %v59 = vshrl.u32 %v58, 7
    %v60 = vsub.s32 0, %v59
    %v61 = vrot.slane %v56, %v60
    %v62 = vlaneseq
    %v63 = vshrl.u32 %v62, 7
    %v64 = vsub.s32 1, %v63
    %v65 = vrot.slane %v56, %v64
    %v68 = vmul.f32 %v51, %v61
    %v69 = vmul.f32 %v52, %v65
    %v70 = vrot.slane %v51, 7
    %v71 = vrot.slane %v52, 7
    %v72 = vld [vmem:[#allocation5] sm:$0x3]
    %v73 = vunpack.c.l.bf16 %v72
    %vm74 = vcmp.eq.s32.totalorder %v54, 0
    %v76 = vlaneseq
    %v77 = vshrl.u32 %v76, 7
    %v78 = vsub.s32 0, %v77
    %v79 = vrot.slane %v73, %v78
    %v80 = vlaneseq
    %v81 = vshrl.u32 %v80, 7
    %v82 = vsub.s32 2, %v81
    %v83 = vrot.slane %v73, %v82
    %v86 = vlaneseq
    %v87 = vshrl.u32 %v86, 7
    %v88 = vsub.s32 0, %v87
    %v89 = vrot.slane %v79, %v88
    %v90 = vlaneseq
    %v91 = vshrl.u32 %v90, 7
    %v92 = vsub.s32 0, %v91
    %v93 = vrot.slane %v83, %v92
    %v94 = vsel %vm74, %v89, %v70
    %v95 = vsel %vm74, %v93, %v71
    %v96 = vld [vmem:[#allocation7] ss:$4 sm:$0x3]
    %v98 = vlaneseq
    %v99 = vshrl.u32 %v98, 7
    %v100 = vsub.s32 0, %v99
    %v101 = vrot.slane %v96, %v100
    %v102 = vlaneseq
    %v103 = vshrl.u32 %v102, 7
    %v104 = vsub.s32 1, %v103
    %v105 = vrot.slane %v96, %v104
    %v108 = vmul.f32 %v94, %v101
    %v109 = vmul.f32 %v95, %v105
    %v110 = vadd.f32 %v68, %v108
    %v111 = vadd.f32 %v69, %v109
    %v112 = vrot.slane %v51, 1
    %v113 = vrot.slane %v52, 1
    %vm114 = vcmp.eq.s32.totalorder %v54, 7
    %v115 = vlaneseq
    %v116 = vshrl.u32 %v115, 7
    %v117 = vsub.s32 1, %v116
    %v118 = vrot.slane %v73, %v117
    %v119 = vlaneseq
    %v120 = vshrl.u32 %v119, 7
    %v121 = vsub.s32 3, %v120
    %v122 = vrot.slane %v73, %v121
    %v125 = vlaneseq
    %v126 = vshrl.u32 %v125, 7
    %v127 = vsub.s32 1, %v126
    %v128 = vrot.slane %v118, %v127
    %v129 = vlaneseq
    %v130 = vshrl.u32 %v129, 7
    %v131 = vsub.s32 1, %v130
    %v132 = vrot.slane %v122, %v131
    %v133 = vsel %vm114, %v128, %v112
    %v134 = vsel %vm114, %v132, %v113
    %s135 = scalar_lea.vmem [#allocation7], 2
    %v136 = vld [vmem:[%s135] ss:$4 sm:$0x3]
    %v138 = vlaneseq
    %v139 = vshrl.u32 %v138, 7
    %v140 = vsub.s32 0, %v139
    %v141 = vrot.slane %v136, %v140
    %v142 = vlaneseq
    %v143 = vshrl.u32 %v142, 7
    %v144 = vsub.s32 1, %v143
    %v145 = vrot.slane %v136, %v144
    %v148 = vmul.f32 %v133, %v141
    %v149 = vmul.f32 %v134, %v145
    %v150 = vadd.f32 %v110, %v148
    %v151 = vadd.f32 %v111, %v149
    %v152 = vpack.c.bf16 %v150, %v150
    %v153 = vpack.c.bf16 %v151, %v151
    %v156 = vunpack.c.l.b16 %v152
    %v157 = vunpack.c.l.b16 %v153
    %v158 = vpack.c.b16 %v157, %v156
    %160 = vst [vmem:[#allocation8] sm:$0xff] %v158
    // Predicated region
    $region26: #{tpu_custom_call.1} parent=1 // pred_check
      _
    $region27: #{tpu_custom_call.1} parent=1 // pred_check_branch
      %162 = sbr.rel (0) target = $region29
    $region28: #{tpu_custom_call.1} parent=1 // pred_region
      %s164 = ssub.s32 128, 128
      %165 = vsyncadd [#allocation4], %s164
      %s167 = sshll.u32 [#allocation8], 4
      %s168 = int_to_ptr.vmem [resolvable:$true] %s167
      %170 = dma.vmem_to_hbm [thread:$0]  %s168, 128, %s3, [#allocation4]
    $region29: #{tpu_custom_call.1} parent=1 // pred_fallthru
      _
    // Predicated region
    $region30: #{tpu_custom_call.1} parent=1 // pred_check
      _
    $region31: #{tpu_custom_call.1} parent=1 // pred_check_branch
      %172 = sbr.rel (0) target = $region33
    $region32: #{tpu_custom_call.1} parent=1 // pred_region
      %173 = dma.done [#allocation4], 128
    $region33: #{tpu_custom_call.1} parent=1 // pred_fallthru
      _
    %174 = vsyncpa [#allocation3], 1
    %175 = vsyncpa [#allocation6], 1
    %176 = vsyncpa [#allocation4], 1

</llo_original>
